<compile_context>
chip_gen: v6e
topology: v6e:2x2x1
jax: 0.10.0
libtpu: 0.0.40
codegen_flags: <defaults>
</compile_context>

<pallas_src>
import jax
import jax.numpy as jnp
from jax.experimental import pallas as pl
from jax.experimental.pallas import tpu as pltpu

BERT_OUTPUT_SIZE = 5
FC_HIDDEN_SIZE = 10
OUT_CLASS_NUMBER = 30

LANE = 128        # lane width: hidden/class axes of the weights padded to this
SUBLANE = 8
MAX_TILE_N = 2048  # rows of embeddings per grid step (multiple of 8)


def _cdiv(a, b):
    return -(-a // b)


def _pad2d(x, rows, cols):
    return jnp.pad(x, ((0, rows - x.shape[0]), (0, cols - x.shape[1])))


def _make_kernel(n_valid, tile_n, blocks_per_shard, n_full_blocks):
    inv_n = 1.0 / float(n_valid)

    def kernel(x_ref, w1_ref, b1_ref, w2_ref, b2_ref, o_ref):
        # x_ref: [tile_n, 5]   w1: [5,128]  b1: [1,128]
        # w2: [128,128]        b2: [1,128]  o_ref: [8,128] (row 0 = partial sum)
        s = pl.program_id(0)                 # shard (parallel axis)
        j = pl.program_id(1)                 # reduction step within shard
        b = s * blocks_per_shard + j         # global (unclamped) block index

        @pl.when(j == 0)
        def _():
            o_ref[...] = jnp.zeros_like(o_ref)

        x = x_ref[...]                                                # [tile_n, 5]
        h = jnp.dot(x, w1_ref[...], preferred_element_type=jnp.float32)
        h = jnp.maximum(h + b1_ref[...], 0.0)                         # fc1 + ReLU
        y = jnp.dot(h, w2_ref[...], preferred_element_type=jnp.float32)
        y = y + b2_ref[...]                                           # fc2
        p = 0.5 * jnp.tanh(0.5 * y) + 0.5                             # sigmoid (EUP)

        # Mean over rows folded into a (1,tile_n)x(tile_n,128) MXU matmul.
        w_row = jnp.full((1, tile_n), inv_n, dtype=jnp.float32)

        @pl.when(b < n_full_blocks)          # steady state: every row is valid
        def _():
            o_ref[0:1, :] += jnp.dot(w_row, p,
                                     preferred_element_type=jnp.float32)

        @pl.when(b >= n_full_blocks)         # tail block / duplicate dummy block
        def _():
            rows = b * tile_n + jax.lax.broadcasted_iota(
                jnp.int32, (tile_n, 1), 0)
            p_m = jnp.where(rows < n_valid, p, 0.0)   # zero OOB-padded rows
            o_ref[0:1, :] += jnp.dot(w_row, p_m,
                                     preferred_element_type=jnp.float32)

    return kernel


def model_1_forward(bert_embeddings, w1, b1, w2, b2):
    """bert_embeddings: [N, BERT_OUTPUT_SIZE] float32 -- BERT-block outputs for
    every comment/review text.  Returns the mean prediction [1, classes]."""
    n, f = bert_embeddings.shape
    hid = w1.shape[1]
    c = w2.shape[1]
    if n == 0:
        raise ValueError("model_1 needs at least one text")

    if n <= MAX_TILE_N:
        tile_n = n                           # one block == full array (legal)
    else:
        tile_n = MAX_TILE_N                  # multiple of 8
    n_blocks = _cdiv(n, tile_n)
    n_full_blocks = n // tile_n              # blocks containing only valid rows

    num_shards = 2 if n_blocks >= 2 else 1   # v7x: one shard per TensorCore
    blocks_per_shard = _cdiv(n_blocks, num_shards)
    grid = (num_shards, blocks_per_shard)

    x = bert_embeddings.astype(jnp.float32)  # streamed unpadded: [n, 5]
    w1_p = _pad2d(w1.astype(jnp.float32), f, LANE)
    b1_p = _pad2d(b1.reshape(1, hid).astype(jnp.float32), 1, LANE)
    w2_p = _pad2d(w2.astype(jnp.float32), LANE, LANE)
    b2_p = _pad2d(b2.reshape(1, c).astype(jnp.float32), 1, LANE)

    def x_map(s, j):
        # Clamp so the (possible) single dummy step of the last shard re-reads
        # a valid block; its rows are masked to zero inside the kernel.
        return (jnp.minimum(s * blocks_per_shard + j, n_blocks - 1), 0)

    rows_processed = num_shards * blocks_per_shard * tile_n
    cost = pl.CostEstimate(
        flops=2 * rows_processed * (f * LANE + LANE * LANE + LANE)
        + 6 * rows_processed * LANE,
        transcendentals=rows_processed * LANE,
        bytes_accessed=4 * (n * f + f * LANE + LANE * LANE + 2 * LANE
                            + num_shards * SUBLANE * LANE),
    )

    out = pl.pallas_call(
        _make_kernel(n, tile_n, blocks_per_shard, n_full_blocks),
        out_shape=jax.ShapeDtypeStruct((num_shards * SUBLANE, LANE),
                                       jnp.float32),
        grid_spec=pltpu.PrefetchScalarGridSpec(
            num_scalar_prefetch=0,
            grid=grid,
            in_specs=[
                pl.BlockSpec((tile_n, f), x_map),                 # x (unpadded)
                pl.BlockSpec((f, LANE), lambda s, j: (0, 0)),     # w1 (whole)
                pl.BlockSpec((1, LANE), lambda s, j: (0, 0)),     # b1 (whole)
                pl.BlockSpec((LANE, LANE), lambda s, j: (0, 0)),  # w2 (whole)
                pl.BlockSpec((1, LANE), lambda s, j: (0, 0)),     # b2 (whole)
            ],
            out_specs=pl.BlockSpec((SUBLANE, LANE), lambda s, j: (s, 0)),
        ),
        compiler_params=pltpu.CompilerParams(
            dimension_semantics=("parallel", "arbitrary"),
        ),
        cost_estimate=cost,
    )(x, w1_p, b1_p, w2_p, b2_p)

    # Row 0 of each shard's 8-row slab holds that shard's 1/N-weighted partial
    # sum; summing shards gives the mean.  Slice off the lane padding.
    partial = out.reshape(num_shards, SUBLANE, LANE)[:, 0, :c]
    return jnp.sum(partial, axis=0, keepdims=True)


def init_params(key):
    # Deterministic nn.Linear-style init (uniform +/- 1/sqrt(fan_in)).
    k1, k2, k3, k4 = jax.random.split(key, 4)
    lim1 = 1.0 / (BERT_OUTPUT_SIZE ** 0.5)
    lim2 = 1.0 / (FC_HIDDEN_SIZE ** 0.5)
    w1 = jax.random.uniform(k1, (BERT_OUTPUT_SIZE, FC_HIDDEN_SIZE),
                            jnp.float32, -lim1, lim1)
    b1 = jax.random.uniform(k2, (FC_HIDDEN_SIZE,), jnp.float32, -lim1, lim1)
    w2 = jax.random.uniform(k3, (FC_HIDDEN_SIZE, OUT_CLASS_NUMBER),
                            jnp.float32, -lim2, lim2)
    b2 = jax.random.uniform(k4, (OUT_CLASS_NUMBER,), jnp.float32, -lim2, lim2)
    return w1, b1, w2, b2


def _reference(x, w1, b1, w2, b2):
    return jnp.mean(
        jax.nn.sigmoid(jnp.maximum(x @ w1 + b1, 0.0) @ w2 + b2),
        axis=0, keepdims=True)


if __name__ == "__main__":
    key = jax.random.PRNGKey(0)
    k1, k2, k3, kp = jax.random.split(key, 4)
    w1, b1, w2, b2 = init_params(kp)

    # TODO(synk): the pretrained BERT block (tokenization + transformer) has no
    # clean Pallas equivalent here; its [N, 5] embeddings are synthesized.

    cases = (
        ("small", k1, 8),        # 4 comments + 4 reviews
        ("one-block", k2, 1030),  # single block equal to the full array
        ("streamed", k3, 5000),   # multi-block, 2 shards, masked tail block
    )
    for name, k, n in cases:
        x = jax.random.normal(k, (n, BERT_OUTPUT_SIZE), jnp.float32)
        got = jax.block_until_ready(model_1_forward(x, w1, b1, w2, b2))
        want = _reference(x, w1, b1, w2, b2)
        assert got.shape == (1, OUT_CLASS_NUMBER), f"bad shape ({name})"
        assert jnp.allclose(got, want, atol=2e-5), f"mismatch ({name})"

    print("KERNEL_OK")
</pallas_src>

<mosaic_0001>
module attributes {stable_mosaic.version = 11 : i64} {
  func.func @kernel(%arg0: i32, %arg1: i32, %arg2: memref<8x5xf32, #tpu.memory_space<vmem>>, %arg3: memref<5x128xf32, #tpu.memory_space<vmem>>, %arg4: memref<1x128xf32, #tpu.memory_space<vmem>>, %arg5: memref<128x128xf32, #tpu.memory_space<vmem>>, %arg6: memref<1x128xf32, #tpu.memory_space<vmem>>, %arg7: memref<8x128xf32, #tpu.memory_space<vmem>>) attributes {dimension_semantics = [#tpu.dimension_semantics<parallel>, #tpu.dimension_semantics<arbitrary>], iteration_bounds = array<i64: 1, 1>, scalar_prefetch = 0 : i64, scratch_operands = 0 : i64, tpu.core_type = #tpu.core_type<tc>, window_params = [{transform_indices = @transform_0, window_bounds = array<i64: 8, 5>}, {pipeline_mode = #tpu.pipeline_mode<synchronous>, transform_indices = @transform_1, window_bounds = array<i64: 5, 128>}, {pipeline_mode = #tpu.pipeline_mode<synchronous>, transform_indices = @transform_2, window_bounds = array<i64: 1, 128>}, {pipeline_mode = #tpu.pipeline_mode<synchronous>, transform_indices = @transform_3, window_bounds = array<i64: 128, 128>}, {pipeline_mode = #tpu.pipeline_mode<synchronous>, transform_indices = @transform_4, window_bounds = array<i64: 1, 128>}, {transform_indices = @transform_5, window_bounds = array<i64: 8, 128>}]} {
    %c1_i32 = arith.constant 1 : i32
    %0 = arith.muli %arg0, %c1_i32 : i32
    %1 = arith.addi %0, %arg1 : i32
    %c0_i32 = arith.constant 0 : i32
    %2 = arith.cmpi eq, %arg1, %c0_i32 : i32
    %3 = arith.extui %2 : i1 to i32
    %c0_i32_0 = arith.constant 0 : i32
    %4 = arith.cmpi ne, %3, %c0_i32_0 : i32
    scf.if %4 {
      %cst_20 = arith.constant 0.000000e+00 : f32
      %32 = vector.broadcast %cst_20 : f32 to vector<8x128xf32>
      %c0_21 = arith.constant 0 : index
      %c0_22 = arith.constant 0 : index
      %33 = vector.load %arg7[%c0_21, %c0_22] : memref<8x128xf32, #tpu.memory_space<vmem>>, vector<8x128xf32>
      tpu.vector_store %arg7[%c0_21, %c0_22], %32 {strides = array<i32>} : memref<8x128xf32, #tpu.memory_space<vmem>>, vector<8x128xf32>,
    } else {
    }
    %c0 = arith.constant 0 : index
    %c0_1 = arith.constant 0 : index
    %5 = vector.load %arg2[%c0, %c0_1] : memref<8x5xf32, #tpu.memory_space<vmem>>, vector<8x5xf32>
    %c0_2 = arith.constant 0 : index
    %c0_3 = arith.constant 0 : index
    %6 = vector.load %arg3[%c0_2, %c0_3] : memref<5x128xf32, #tpu.memory_space<vmem>>, vector<5x128xf32>
    %cst = arith.constant dense<0.000000e+00> : vector<8x128xf32>
    %7 = tpu.matmul %5, %6, %cst {dimension_numbers = #tpu.dot_dimension_numbers<[1], [0], [0], [1], [0, 0, 1, 1], [], []>} : vector<8x5xf32>, vector<5x128xf32>, vector<8x128xf32> -> vector<8x128xf32>
    %c0_4 = arith.constant 0 : index
    %c0_5 = arith.constant 0 : index
    %8 = vector.load %arg4[%c0_4, %c0_5] : memref<1x128xf32, #tpu.memory_space<vmem>>, vector<1x128xf32>
    %9 = vector.broadcast %8 : vector<1x128xf32> to vector<8x128xf32>
    %10 = arith.addf %7, %9 : vector<8x128xf32>
    %cst_6 = arith.constant 0.000000e+00 : f32
    %11 = vector.broadcast %cst_6 : f32 to vector<8x128xf32>
    %12 = arith.maximumf %10, %11 : vector<8x128xf32>
    %c0_7 = arith.constant 0 : index
    %c0_8 = arith.constant 0 : index
    %13 = vector.load %arg5[%c0_7, %c0_8] : memref<128x128xf32, #tpu.memory_space<vmem>>, vector<128x128xf32>
    %cst_9 = arith.constant dense<0.000000e+00> : vector<8x128xf32>
    %14 = tpu.matmul %12, %13, %cst_9 {dimension_numbers = #tpu.dot_dimension_numbers<[1], [0], [0], [1], [0, 0, 1, 1], [], []>} : vector<8x128xf32>, vector<128x128xf32>, vector<8x128xf32> -> vector<8x128xf32>
    %c0_10 = arith.constant 0 : index
    %c0_11 = arith.constant 0 : index
    %15 = vector.load %arg6[%c0_10, %c0_11] : memref<1x128xf32, #tpu.memory_space<vmem>>, vector<1x128xf32>
    %16 = vector.broadcast %15 : vector<1x128xf32> to vector<8x128xf32>
    %17 = arith.addf %14, %16 : vector<8x128xf32>
    %cst_12 = arith.constant 5.000000e-01 : f32
    %18 = vector.broadcast %cst_12 : f32 to vector<8x128xf32>
    %19 = arith.mulf %18, %17 : vector<8x128xf32>
    %20 = math.tanh %19 : vector<8x128xf32>
    %cst_13 = arith.constant 5.000000e-01 : f32
    %21 = vector.broadcast %cst_13 : f32 to vector<8x128xf32>
    %22 = arith.mulf %21, %20 : vector<8x128xf32>
    %cst_14 = arith.constant 5.000000e-01 : f32
    %23 = vector.broadcast %cst_14 : f32 to vector<8x128xf32>
    %24 = arith.addf %22, %23 : vector<8x128xf32>
    %cst_15 = arith.constant 1.250000e-01 : f32
    %25 = vector.broadcast %cst_15 : f32 to vector<1x8xf32>
    %c1_i32_16 = arith.constant 1 : i32
    %26 = arith.cmpi slt, %1, %c1_i32_16 : i32
    %27 = arith.extui %26 : i1 to i32
    %c0_i32_17 = arith.constant 0 : i32
    %28 = arith.cmpi ne, %27, %c0_i32_17 : i32
    scf.if %28 {
      %c0_20 = arith.constant 0 : index
      %c0_21 = arith.constant 0 : index
      %32 = vector.load %arg7[%c0_20, %c0_21] : memref<8x128xf32, #tpu.memory_space<vmem>>, vector<1x128xf32>
      %cst_22 = arith.constant dense<0.000000e+00> : vector<1x128xf32>
      %33 = tpu.matmul %25, %24, %cst_22 {dimension_numbers = #tpu.dot_dimension_numbers<[1], [0], [0], [1], [0, 0, 1, 1], [], []>} : vector<1x8xf32>, vector<8x128xf32>, vector<1x128xf32> -> vector<1x128xf32>
      %34 = arith.addf %32, %33 : vector<1x128xf32>
      %c0_23 = arith.constant 0 : index
      %c0_24 = arith.constant 0 : index
      %35 = vector.load %arg7[%c0_23, %c0_24] : memref<8x128xf32, #tpu.memory_space<vmem>>, vector<1x128xf32>
      tpu.vector_store %arg7[%c0_23, %c0_24], %34 {strides = array<i32>} : memref<8x128xf32, #tpu.memory_space<vmem>>, vector<1x128xf32>,
    } else {
    }
    %c1_i32_18 = arith.constant 1 : i32
    %29 = arith.cmpi sge, %1, %c1_i32_18 : i32
    %30 = arith.extui %29 : i1 to i32
    %c0_i32_19 = arith.constant 0 : i32
    %31 = arith.cmpi ne, %30, %c0_i32_19 : i32
    scf.if %31 {
      %c8_i32 = arith.constant 8 : i32
      %32 = arith.muli %1, %c8_i32 : i32
      %33 = tpu.iota {dimensions = array<i32: 0>} : vector<8x1xi32>
      %34 = vector.broadcast %32 : i32 to vector<8x1xi32>
      %35 = arith.addi %34, %33 : vector<8x1xi32>
      %c8_i32_20 = arith.constant 8 : i32
      %36 = vector.broadcast %c8_i32_20 : i32 to vector<8x1xi32>
      %37 = arith.cmpi slt, %35, %36 : vector<8x1xi32>
      %cst_21 = arith.constant 0.000000e+00 : f32
      %38 = vector.shape_cast %37 : vector<8x1xi1> to vector<8x1xi1>
      %39 = vector.broadcast %38 : vector<8x1xi1> to vector<8x128xi1>
      %40 = vector.broadcast %cst_21 : f32 to vector<8x128xf32>
      %41 = arith.select %39, %24, %40 : vector<8x128xi1>, vector<8x128xf32>
      %c0_22 = arith.constant 0 : index
      %c0_23 = arith.constant 0 : index
      %42 = vector.load %arg7[%c0_22, %c0_23] : memref<8x128xf32, #tpu.memory_space<vmem>>, vector<1x128xf32>
      %cst_24 = arith.constant dense<0.000000e+00> : vector<1x128xf32>
      %43 = tpu.matmul %25, %41, %cst_24 {dimension_numbers = #tpu.dot_dimension_numbers<[1], [0], [0], [1], [0, 0, 1, 1], [], []>} : vector<1x8xf32>, vector<8x128xf32>, vector<1x128xf32> -> vector<1x128xf32>
      %44 = arith.addf %42, %43 : vector<1x128xf32>
      %c0_25 = arith.constant 0 : index
      %c0_26 = arith.constant 0 : index
      %45 = vector.load %arg7[%c0_25, %c0_26] : memref<8x128xf32, #tpu.memory_space<vmem>>, vector<1x128xf32>
      tpu.vector_store %arg7[%c0_25, %c0_26], %44 {strides = array<i32>} : memref<8x128xf32, #tpu.memory_space<vmem>>, vector<1x128xf32>,
    } else {
    }
    return
  }
  func.func @transform_0(%arg0: i32, %arg1: i32) -> (i32, i32) {
    %c1_i32 = arith.constant 1 : i32
    %0 = arith.muli %arg0, %c1_i32 : i32
    %1 = arith.addi %0, %arg1 : i32
    %c0_i32 = arith.constant 0 : i32
    %2 = arith.minsi %1, %c0_i32 : i32
    %c0_i32_0 = arith.constant 0 : i32
    %c0_i32_1 = arith.constant 0 : i32
    return %2, %c0_i32_0 : i32, i32
  }
  func.func @transform_1(%arg0: i32, %arg1: i32) -> (i32, i32) {
    %c0_i32 = arith.constant 0 : i32
    %c0_i32_0 = arith.constant 0 : i32
    %c0_i32_1 = arith.constant 0 : i32
    return %c0_i32, %c0_i32_0 : i32, i32
  }
  func.func @transform_2(%arg0: i32, %arg1: i32) -> (i32, i32) {
    %c0_i32 = arith.constant 0 : i32
    %c0_i32_0 = arith.constant 0 : i32
    %c0_i32_1 = arith.constant 0 : i32
    return %c0_i32, %c0_i32_0 : i32, i32
  }
  func.func @transform_3(%arg0: i32, %arg1: i32) -> (i32, i32) {
    %c0_i32 = arith.constant 0 : i32
    %c0_i32_0 = arith.constant 0 : i32
    %c0_i32_1 = arith.constant 0 : i32
    return %c0_i32, %c0_i32_0 : i32, i32
  }
  func.func @transform_4(%arg0: i32, %arg1: i32) -> (i32, i32) {
    %c0_i32 = arith.constant 0 : i32
    %c0_i32_0 = arith.constant 0 : i32
    %c0_i32_1 = arith.constant 0 : i32
    return %c0_i32, %c0_i32_0 : i32, i32
  }
  func.func @transform_5(%arg0: i32, %arg1: i32) -> (i32, i32) {
    %c0_i32 = arith.constant 0 : i32
    %c0_i32_0 = arith.constant 0 : i32
    return %arg0, %c0_i32 : i32, i32
  }
}

</mosaic_0001>

<llo_original>
// kernel: tpu_custom_call.1
$region0: #{tpu_custom_call.1}
  #allocation0 [shape = 'u32[]', space=smem, size = 0x4, offset = 0x4, fixed_abs, tag = 'smem constant byte address 0x4 - core index']
  #allocation1 [shape = 'u32[144,128]{1,0:T(1,128)}', space=vmem, size = 0x12000, scoped, tag = 'internal scratch']
  %s0 = inlined_call_operand.hbm [shape: f32[8,5], index: 0, kind: input, shape index: {}]
  %s1 = inlined_call_operand.hbm [shape: f32[5,128], index: 1, kind: input, shape index: {}]
  %s2 = inlined_call_operand.vmem [shape: f32[1,128], index: 2, kind: input, shape index: {}]
  %s3 = inlined_call_operand.hbm [shape: f32[128,128], index: 3, kind: input, shape index: {}]
  %s4 = inlined_call_operand.vmem [shape: f32[1,128], index: 4, kind: input, shape index: {}]
  %s5 = inlined_call_operand.hbm [shape: f32[8,128], index: 5, kind: output, shape index: {}]
  %s6 = sld [smem:[#allocation0]]
  $region54: #{tpu_custom_call.1} parent=0
    _
  %s8 = ssub.s32 1, %s6
  %s9 = scalar_select 0, %s8, %s6
  $region1: #{tpu_custom_call.1} parent=0
    #allocation2 [shape = 'u8[4096]{0}', space=vmem, size = 0x1000, scoped, tag = 'input window, operand 0, single buffered']
    #allocation3 [shape = 's32[1]{0}', space=sflag, size = 0x4, scoped, tag = 'scoped memory for tpu_custom_call.1']
    #allocation4 [shape = 's32[1]{0}', space=sflag, size = 0x4, scoped, tag = 'scoped memory for tpu_custom_call.1']
    #allocation5 [shape = 'u8[4096]{0}', space=vmem, size = 0x1000, scoped, tag = 'input window, operand 1, single buffered']
    #allocation6 [shape = 's32[1]{0}', space=sflag, size = 0x4, scoped, tag = 'scoped memory for tpu_custom_call.1']
    #allocation7 [shape = 'u8[65536]{0}', space=vmem, size = 0x10000, scoped, tag = 'input window, operand 3, single buffered']
    #allocation8 [shape = 'u8[4096]{0}', space=vmem, size = 0x1000, scoped, tag = 'output window, operand 0, single buffered']
    %10 = vsyncpa [#allocation3], 0
    %11 = vsyncpa [#allocation6], 0
    %12 = vsyncpa [#allocation4], 0
    // Predicated region
    $region2: #{tpu_custom_call.1} parent=1 // pred_check
      _
    $region3: #{tpu_custom_call.1} parent=1 // pred_check_branch
      %14 = sbr.rel (0) target = $region5
    $region4: #{tpu_custom_call.1} parent=1 // pred_region
      %s15 = sadd.s32 0, 0
      %p16 = scmp.lt.s32.totalorder %s15, 0
      %s17 = scalar_select %p16, %s15, 0
      %s19 = ssub.s32 128, 128
      %20 = vsyncadd [#allocation3], %s19
      %s21 = smul.addr %s17, 128
      %s22 = scalar_lea.hbm %s0, %s21
      %s24 = sshll.u32 [#allocation2], 4
      %s25 = int_to_ptr.vmem [resolvable:$true] %s24
      %27 = dma.hbm_to_vmem [thread:$0]  %s22, 128, %s25, [#allocation3]
    $region5: #{tpu_custom_call.1} parent=1 // pred_fallthru
      _
    // Predicated region
    $region6: #{tpu_custom_call.1} parent=1 // pred_check
      _
    $region7: #{tpu_custom_call.1} parent=1 // pred_check_branch
      %29 = sbr.rel (0) target = $region9
    $region8: #{tpu_custom_call.1} parent=1 // pred_region
      %s31 = ssub.s32 128, 128
      %32 = vsyncadd [#allocation6], %s31
      %s34 = sshll.u32 [#allocation5], 4
      %s35 = int_to_ptr.vmem [resolvable:$true] %s34
      %37 = dma.hbm_to_vmem [thread:$0]  %s1, 128, %s35, [#allocation6]
    $region9: #{tpu_custom_call.1} parent=1 // pred_fallthru
      _
    // Predicated region
    $region10: #{tpu_custom_call.1} parent=1 // pred_check
      _
    $region11: #{tpu_custom_call.1} parent=1 // pred_check_branch
      %39 = sbr.rel (0) target = $region13
    $region12: #{tpu_custom_call.1} parent=1 // pred_region
      _
    $region13: #{tpu_custom_call.1} parent=1 // pred_fallthru
      _
    // Predicated region
    $region14: #{tpu_custom_call.1} parent=1 // pred_check
      _
    $region15: #{tpu_custom_call.1} parent=1 // pred_check_branch
      %41 = sbr.rel (0) target = $region17
    $region16: #{tpu_custom_call.1} parent=1 // pred_region
      %s43 = ssub.s32 2048, 2048
      %44 = vsyncadd [#allocation6], %s43
      %s45 = sshll.u32 [#allocation7], 4
      %s46 = int_to_ptr.vmem [resolvable:$true] %s45
      %51 = dma.hbm_to_vmem [thread:$0]  %s3, 2048, %s46, [#allocation6], 128, 128, 8
    $region17: #{tpu_custom_call.1} parent=1 // pred_fallthru
      _
    // Predicated region
    $region18: #{tpu_custom_call.1} parent=1 // pred_check
      _
    $region19: #{tpu_custom_call.1} parent=1 // pred_check_branch
      %53 = sbr.rel (0) target = $region21
    $region20: #{tpu_custom_call.1} parent=1 // pred_region
      _
    $region21: #{tpu_custom_call.1} parent=1 // pred_fallthru
      _
    // Predicated region
    $region22: #{tpu_custom_call.1} parent=1 // pred_check
      _
    $region23: #{tpu_custom_call.1} parent=1 // pred_check_branch
      %55 = sbr.rel (0) target = $region25
    $region24: #{tpu_custom_call.1} parent=1 // pred_region
      %56 = dma.done [#allocation3], 128
    $region25: #{tpu_custom_call.1} parent=1 // pred_fallthru
      _
    // Predicated region
    $region26: #{tpu_custom_call.1} parent=1 // pred_check
      _
    $region27: #{tpu_custom_call.1} parent=1 // pred_check_branch
      %58 = sbr.rel (0) target = $region29
    $region28: #{tpu_custom_call.1} parent=1 // pred_region
      %59 = dma.done [#allocation6], 128
    $region29: #{tpu_custom_call.1} parent=1 // pred_fallthru
      _
    // Predicated region
    $region30: #{tpu_custom_call.1} parent=1 // pred_check
      _
    $region31: #{tpu_custom_call.1} parent=1 // pred_check_branch
      %61 = sbr.rel (0) target = $region33
    $region32: #{tpu_custom_call.1} parent=1 // pred_region
      %62 = dma.done [#allocation6], 2048
    $region33: #{tpu_custom_call.1} parent=1 // pred_fallthru
      _
    %s63 = sadd.s32 0, 0
    %p64 = scmp.lt.s32.totalorder %s63, 0
    %s65 = scalar_select %p64, %s63, 0
    %s66 = sadd.s32 0, 0
    %p67 = scmp.eq.s32.totalorder 0, 0
    // Predicated region
    $region34: #{tpu_custom_call.1} parent=1 // pred_check
      %p68 = pneg %p67
    $region35: #{tpu_custom_call.1} parent=1 // pred_check_branch
      %70 = sbr.rel (%p68) target = $region37
    $region36: #{tpu_custom_call.1} parent=1 // pred_region
      %71 = vst [vmem:[#allocation8] sm:$0xff] 0.0
    $region37: #{tpu_custom_call.1} parent=1 // pred_fallthru
      _
    %v72 = vld [vmem:[#allocation2] sm:$0xff]
    %v73 = vld [vmem:[#allocation5] sm:$0x1f]
    %v74 = vld [vmem:[%s2] sm:$0x1]
    %v76 = vlaneseq
    %v77 = vshrl.u32 %v76, 7
    %v78 = vsub.s32 0, %v77
    %v79 = vrot.slane %v74, %v78
    %vm81 = vcmask 39936
    %v83 = vsel %vm81, %v72, 0
    %vm85 = vcmask 1044480
    %v87 = vsel %vm85, %v73, 0
    %89 = vmatprep.subr.mxu0 0.0
    %90 = vmatpush1.msra.mxu0 0.0
    %91 = vmatprep.subr.mxu0 0.0
    %92 = vmatpush1.msra.mxu0 0.0
    %93 = vmatprep.subr.mxu0 0.0
    %94 = vmatpush1.msra.mxu0 0.0
    %95 = vmatprep.subr.mxu0 0.0
    %96 = vmatpush1.msra.mxu0 0.0
    %97 = vmatprep.subr.mxu0 0.0
    %98 = vmatpush1.msra.mxu0 0.0
    %99 = vmatprep.subr.mxu0 0.0
    %100 = vmatpush1.msra.mxu0 0.0
    %101 = vmatprep.subr.mxu0 0.0
    %102 = vmatpush1.msra.mxu0 0.0
    %103 = vmatprep.subr.mxu0 0.0
    %104 = vmatpush1.msra.mxu0 0.0
    %105 = vmatprep.subr.mxu0 0.0
    %106 = vmatpush1.msra.mxu0 0.0
    %107 = vmatprep.subr.mxu0 0.0
    %108 = vmatpush1.msra.mxu0 0.0
    %109 = vmatprep.subr.mxu0 0.0
    %110 = vmatpush1.msra.mxu0 0.0
    %111 = vmatprep.subr.mxu0 0.0
    %112 = vmatpush1.msra.mxu0 0.0
    %113 = vmatprep.subr.mxu0 0.0
    %114 = vmatpush1.msra.mxu0 0.0
    %115 = vmatprep.subr.mxu0 0.0
    %116 = vmatpush1.msra.mxu0 0.0
    %117 = vmatprep.subr.mxu0 0.0
    %118 = vmatpush1.msra.mxu0 0.0
    %119 = vmatprep.subr.mxu0 0.0
    %120 = vmatpush1.msra.mxu0 %v87
    %121 = vmatprep.subr.mxu0 0.0
    %122 = vmatpush2.msra.mxu0 0.0
    %123 = vmatprep.subr.mxu0 0.0
    %124 = vmatpush2.msra.mxu0 0.0
    %125 = vmatprep.subr.mxu0 0.0
    %126 = vmatpush2.msra.mxu0 0.0
    %127 = vmatprep.subr.mxu0 0.0
    %128 = vmatpush2.msra.mxu0 0.0
    %129 = vmatprep.subr.mxu0 0.0
    %130 = vmatpush2.msra.mxu0 0.0
    %131 = vmatprep.subr.mxu0 0.0
    %132 = vmatpush2.msra.mxu0 0.0
    %133 = vmatprep.subr.mxu0 0.0
    %134 = vmatpush2.msra.mxu0 0.0
    %135 = vmatprep.subr.mxu0 0.0
    %136 = vmatpush2.msra.mxu0 0.0
    %137 = vmatprep.subr.mxu0 0.0
    %138 = vmatpush2.msra.mxu0 0.0
    %139 = vmatprep.subr.mxu0 0.0
    %140 = vmatpush2.msra.mxu0 0.0
    %141 = vmatprep.subr.mxu0 0.0
    %142 = vmatpush2.msra.mxu0 0.0
    %143 = vmatprep.subr.mxu0 0.0
    %144 = vmatpush2.msra.mxu0 0.0
    %145 = vmatprep.subr.mxu0 0.0
    %146 = vmatpush2.msra.mxu0 0.0
    %147 = vmatprep.subr.mxu0 0.0
    %148 = vmatpush2.msra.mxu0 0.0
    %149 = vmatprep.subr.mxu0 0.0
    %150 = vmatpush2.msra.mxu0 0.0
    %151 = vmatprep.subr.mxu0 0.0
    %152 = vmatpush2.msra.mxu0 0.0
    %153 = vmatprep.mubr.f32.mxu0 0.0
    %154 = vmatmul.mubr.f32.gmra.mxu0 %v83
    %v155 = vpop.f32.mrf.mxu0
    %v156 = vadd.f32 %v79, %v155
    %v157 = vpop.f32.mrf.mxu0
    %158 = vdwg.mxu0
    %v159 = vmax.f32 %v156, 0.0
    %v160 = vld [vmem:[#allocation7] sm:$0xff]
    %v161 = vld [vmem:[#allocation7 + $0x8] sm:$0xff]
    %v162 = vld [vmem:[#allocation7 + $0x10] sm:$0xff]
    %v163 = vld [vmem:[#allocation7 + $0x18] sm:$0xff]
    %v164 = vld [vmem:[#allocation7 + $0x20] sm:$0xff]
    %v165 = vld [vmem:[#allocation7 + $0x28] sm:$0xff]
    %v166 = vld [vmem:[#allocation7 + $0x30] sm:$0xff]
    %v167 = vld [vmem:[#allocation7 + $0x38] sm:$0xff]
    %v168 = vld [vmem:[#allocation7 + $0x40] sm:$0xff]
    %v169 = vld [vmem:[#allocation7 + $0x48] sm:$0xff]
    %v170 = vld [vmem:[#allocation7 + $0x50] sm:$0xff]
    %v171 = vld [vmem:[#allocation7 + $0x58] sm:$0xff]
    %v172 = vld [vmem:[#allocation7 + $0x60] sm:$0xff]
    %v173 = vld [vmem:[#allocation7 + $0x68] sm:$0xff]
    %v174 = vld [vmem:[#allocation7 + $0x70] sm:$0xff]
    %v175 = vld [vmem:[#allocation7 + $0x78] sm:$0xff]
    %v176 = vld [vmem:[%s4] sm:$0x1]
    %v178 = vlaneseq
    %v179 = vshrl.u32 %v178, 7
    %v180 = vsub.s32 0, %v179
    %v181 = vrot.slane %v176, %v180
    %183 = vmatprep.subr.mxu0 0.0
    %184 = vmatpush1.msra.mxu0 %v175
    %185 = vmatprep.subr.mxu0 0.0
    %186 = vmatpush1.msra.mxu0 %v174
    %187 = vmatprep.subr.mxu0 0.0
    %188 = vmatpush1.msra.mxu0 %v173
    %189 = vmatprep.subr.mxu0 0.0
    %190 = vmatpush1.msra.mxu0 %v172
    %191 = vmatprep.subr.mxu0 0.0
    %192 = vmatpush1.msra.mxu0 %v171
    %193 = vmatprep.subr.mxu0 0.0
    %194 = vmatpush1.msra.mxu0 %v170
    %195 = vmatprep.subr.mxu0 0.0
    %196 = vmatpush1.msra.mxu0 %v169
    %197 = vmatprep.subr.mxu0 0.0
    %198 = vmatpush1.msra.mxu0 %v168
    %199 = vmatprep.subr.mxu0 0.0
    %200 = vmatpush1.msra.mxu0 %v167
    %201 = vmatprep.subr.mxu0 0.0
    %202 = vmatpush1.msra.mxu0 %v166
    %203 = vmatprep.subr.mxu0 0.0
    %204 = vmatpush1.msra.mxu0 %v165
    %205 = vmatprep.subr.mxu0 0.0
    %206 = vmatpush1.msra.mxu0 %v164
    %207 = vmatprep.subr.mxu0 0.0
    %208 = vmatpush1.msra.mxu0 %v163
    %209 = vmatprep.subr.mxu0 0.0
    %210 = vmatpush1.msra.mxu0 %v162
    %211 = vmatprep.subr.mxu0 0.0
    %212 = vmatpush1.msra.mxu0 %v161
    %213 = vmatprep.subr.mxu0 0.0
    %214 = vmatpush1.msra.mxu0 %v160
    %215 = vmatprep.subr.mxu0 0.0
    %216 = vmatpush2.msra.mxu0 0.0
    %217 = vmatprep.subr.mxu0 0.0
    %218 = vmatpush2.msra.mxu0 0.0
    %219 = vmatprep.subr.mxu0 0.0
    %220 = vmatpush2.msra.mxu0 0.0
    %221 = vmatprep.subr.mxu0 0.0
    %222 = vmatpush2.msra.mxu0 0.0
    %223 = vmatprep.subr.mxu0 0.0
    %224 = vmatpush2.msra.mxu0 0.0
    %225 = vmatprep.subr.mxu0 0.0
    %226 = vmatpush2.msra.mxu0 0.0
    %227 = vmatprep.subr.mxu0 0.0
    %228 = vmatpush2.msra.mxu0 0.0
    %229 = vmatprep.subr.mxu0 0.0
    %230 = vmatpush2.msra.mxu0 0.0
    %231 = vmatprep.subr.mxu0 0.0
    %232 = vmatpush2.msra.mxu0 0.0
    %233 = vmatprep.subr.mxu0 0.0
    %234 = vmatpush2.msra.mxu0 0.0
    %235 = vmatprep.subr.mxu0 0.0
    %236 = vmatpush2.msra.mxu0 0.0
    %237 = vmatprep.subr.mxu0 0.0
    %238 = vmatpush2.msra.mxu0 0.0
    %239 = vmatprep.subr.mxu0 0.0
    %240 = vmatpush2.msra.mxu0 0.0
    %241 = vmatprep.subr.mxu0 0.0
    %242 = vmatpush2.msra.mxu0 0.0
    %243 = vmatprep.subr.mxu0 0.0
    %244 = vmatpush2.msra.mxu0 0.0
    %245 = vmatprep.subr.mxu0 0.0
    %246 = vmatpush2.msra.mxu0 0.0
    %247 = vmatprep.mubr.f32.mxu0 0.0
    %248 = vmatmul.mubr.f32.gmra.mxu0 %v159
    %v249 = vpop.f32.mrf.mxu0
    %v250 = vadd.f32 %v181, %v249
    %v251 = vpop.f32.mrf.mxu0
    %252 = vdwg.mxu0
    %v253 = vmul.f32 %v250, 0.5
    %v254 = vtanh.pop %v253
    %v255 = vmul.f32 %v254, 0.5
    %v256 = vadd.f32 %v255, 0.5
    %p257 = scmp.lt.s32.totalorder %s66, 1
    // Predicated region
    $region38: #{tpu_custom_call.1} parent=1 // pred_check
      %p258 = pneg %p257
    $region39: #{tpu_custom_call.1} parent=1 // pred_check_branch
      %260 = sbr.rel (%p258) target = $region41
    $region40: #{tpu_custom_call.1} parent=1 // pred_region
      %v261 = vld [vmem:[#allocation8] sm:$0x1]
      %vm262 = vcmask 64512
      %v264 = vsel %vm262, 0.125, 0
      %266 = vmatprep.subr.mxu0 0.0
      %267 = vmatpush1.msra.mxu0 0.0
      %268 = vmatprep.subr.mxu0 0.0
      %269 = vmatpush1.msra.mxu0 0.0
      %270 = vmatprep.subr.mxu0 0.0
      %271 = vmatpush1.msra.mxu0 0.0
      %272 = vmatprep.subr.mxu0 0.0
      %273 = vmatpush1.msra.mxu0 0.0
      %274 = vmatprep.subr.mxu0 0.0
      %275 = vmatpush1.msra.mxu0 0.0
      %276 = vmatprep.subr.mxu0 0.0
      %277 = vmatpush1.msra.mxu0 0.0
      %278 = vmatprep.subr.mxu0 0.0
      %279 = vmatpush1.msra.mxu0 0.0
      %280 = vmatprep.subr.mxu0 0.0
      %281 = vmatpush1.msra.mxu0 0.0
      %282 = vmatprep.subr.mxu0 0.0
      %283 = vmatpush1.msra.mxu0 0.0
      %284 = vmatprep.subr.mxu0 0.0
      %285 = vmatpush1.msra.mxu0 0.0
      %286 = vmatprep.subr.mxu0 0.0
      %287 = vmatpush1.msra.mxu0 0.0
      %288 = vmatprep.subr.mxu0 0.0
      %289 = vmatpush1.msra.mxu0 0.0
      %290 = vmatprep.subr.mxu0 0.0
      %291 = vmatpush1.msra.mxu0 0.0
      %292 = vmatprep.subr.mxu0 0.0
      %293 = vmatpush1.msra.mxu0 0.0
      %294 = vmatprep.subr.mxu0 0.0
      %295 = vmatpush1.msra.mxu0 0.0
      %296 = vmatprep.subr.mxu0 0.0
      %297 = vmatpush1.msra.mxu0 %v256
      %298 = vmatprep.subr.mxu0 0.0
      %299 = vmatpush2.msra.mxu0 0.0
      %300 = vmatprep.subr.mxu0 0.0
      %301 = vmatpush2.msra.mxu0 0.0
      %302 = vmatprep.subr.mxu0 0.0
      %303 = vmatpush2.msra.mxu0 0.0
      %304 = vmatprep.subr.mxu0 0.0
      %305 = vmatpush2.msra.mxu0 0.0
      %306 = vmatprep.subr.mxu0 0.0
      %307 = vmatpush2.msra.mxu0 0.0
      %308 = vmatprep.subr.mxu0 0.0
      %309 = vmatpush2.msra.mxu0 0.0
      %310 = vmatprep.subr.mxu0 0.0
      %311 = vmatpush2.msra.mxu0 0.0
      %312 = vmatprep.subr.mxu0 0.0
      %313 = vmatpush2.msra.mxu0 0.0
      %314 = vmatprep.subr.mxu0 0.0
      %315 = vmatpush2.msra.mxu0 0.0
      %316 = vmatprep.subr.mxu0 0.0
      %317 = vmatpush2.msra.mxu0 0.0
      %318 = vmatprep.subr.mxu0 0.0
      %319 = vmatpush2.msra.mxu0 0.0
      %320 = vmatprep.subr.mxu0 0.0
      %321 = vmatpush2.msra.mxu0 0.0
      %322 = vmatprep.subr.mxu0 0.0
      %323 = vmatpush2.msra.mxu0 0.0
      %324 = vmatprep.subr.mxu0 0.0
      %325 = vmatpush2.msra.mxu0 0.0
      %326 = vmatprep.subr.mxu0 0.0
      %327 = vmatpush2.msra.mxu0 0.0
      %328 = vmatprep.subr.mxu0 0.0
      %329 = vmatpush2.msra.mxu0 0.0
      %330 = vmatprep.mubr.f32.mxu0 0.0
      %331 = vmatmul.mubr.f32.gmra.mxu0 %v264
      %v332 = vpop.f32.mrf.mxu0
      %v333 = vadd.f32 0.0, %v332
      %v334 = vpop.f32.mrf.mxu0
      %335 = vdwg.mxu0
      %v336 = vadd.f32 %v261, %v333
      %337 = vst [vmem:[#allocation8] sm:$0x1] %v336
    $region41: #{tpu_custom_call.1} parent=1 // pred_fallthru
      _
    %p338 = scmp.ge.s32.totalorder %s66, 1
    // Predicated region
    $region42: #{tpu_custom_call.1} parent=1 // pred_check
      %p339 = pneg %p338
    $region43: #{tpu_custom_call.1} parent=1 // pred_check_branch
      %341 = sbr.rel (%p339) target = $region45
    $region44: #{tpu_custom_call.1} parent=1 // pred_region
      %s342 = smul.u32 %s66, 8
      %v343 = vlaneseq
      %v344 = vshrl.u32 %v343, 7
      %v345 = vstv %s342
      %v346 = vadd.s32 %v345, %v344
      %vm347 = vcmp.lt.s32.totalorder %v346, 8
      %v348 = vsel %vm347, 1, 0
      %vm349 = vcmp.eq.s32.totalorder %v348, 1
      %v350 = vsel %vm349, %v256, 0.0
      %v351 = vld [vmem:[#allocation8] sm:$0x1]
      %vm352 = vcmask 64512
      %v354 = vsel %vm352, 0.125, 0
      %356 = vmatprep.subr.mxu0 0.0
      %357 = vmatpush1.msra.mxu0 0.0
      %358 = vmatprep.subr.mxu0 0.0
      %359 = vmatpush1.msra.mxu0 0.0
      %360 = vmatprep.subr.mxu0 0.0
      %361 = vmatpush1.msra.mxu0 0.0
      %362 = vmatprep.subr.mxu0 0.0
      %363 = vmatpush1.msra.mxu0 0.0
      %364 = vmatprep.subr.mxu0 0.0
      %365 = vmatpush1.msra.mxu0 0.0
      %366 = vmatprep.subr.mxu0 0.0
      %367 = vmatpush1.msra.mxu0 0.0
      %368 = vmatprep.subr.mxu0 0.0
      %369 = vmatpush1.msra.mxu0 0.0
      %370 = vmatprep.subr.mxu0 0.0
      %371 = vmatpush1.msra.mxu0 0.0
      %372 = vmatprep.subr.mxu0 0.0
      %373 = vmatpush1.msra.mxu0 0.0
      %374 = vmatprep.subr.mxu0 0.0
      %375 = vmatpush1.msra.mxu0 0.0
      %376 = vmatprep.subr.mxu0 0.0
      %377 = vmatpush1.msra.mxu0 0.0
      %378 = vmatprep.subr.mxu0 0.0
      %379 = vmatpush1.msra.mxu0 0.0
      %380 = vmatprep.subr.mxu0 0.0
      %381 = vmatpush1.msra.mxu0 0.0
      %382 = vmatprep.subr.mxu0 0.0
      %383 = vmatpush1.msra.mxu0 0.0
      %384 = vmatprep.subr.mxu0 0.0
      %385 = vmatpush1.msra.mxu0 0.0
      %386 = vmatprep.subr.mxu0 0.0
      %387 = vmatpush1.msra.mxu0 %v350
      %388 = vmatprep.subr.mxu0 0.0
      %389 = vmatpush2.msra.mxu0 0.0
      %390 = vmatprep.subr.mxu0 0.0
      %391 = vmatpush2.msra.mxu0 0.0
      %392 = vmatprep.subr.mxu0 0.0
      %393 = vmatpush2.msra.mxu0 0.0
      %394 = vmatprep.subr.mxu0 0.0
      %395 = vmatpush2.msra.mxu0 0.0
      %396 = vmatprep.subr.mxu0 0.0
      %397 = vmatpush2.msra.mxu0 0.0
      %398 = vmatprep.subr.mxu0 0.0
      %399 = vmatpush2.msra.mxu0 0.0
      %400 = vmatprep.subr.mxu0 0.0
      %401 = vmatpush2.msra.mxu0 0.0
      %402 = vmatprep.subr.mxu0 0.0
      %403 = vmatpush2.msra.mxu0 0.0
      %404 = vmatprep.subr.mxu0 0.0
      %405 = vmatpush2.msra.mxu0 0.0
      %406 = vmatprep.subr.mxu0 0.0
      %407 = vmatpush2.msra.mxu0 0.0
      %408 = vmatprep.subr.mxu0 0.0
      %409 = vmatpush2.msra.mxu0 0.0
      %410 = vmatprep.subr.mxu0 0.0
      %411 = vmatpush2.msra.mxu0 0.0
      %412 = vmatprep.subr.mxu0 0.0
      %413 = vmatpush2.msra.mxu0 0.0
      %414 = vmatprep.subr.mxu0 0.0
      %415 = vmatpush2.msra.mxu0 0.0
      %416 = vmatprep.subr.mxu0 0.0
      %417 = vmatpush2.msra.mxu0 0.0
      %418 = vmatprep.subr.mxu0 0.0
      %419 = vmatpush2.msra.mxu0 0.0
      %420 = vmatprep.mubr.f32.mxu0 0.0
      %421 = vmatmul.mubr.f32.gmra.mxu0 %v354
      %v422 = vpop.f32.mrf.mxu0
      %v423 = vadd.f32 0.0, %v422
      %v424 = vpop.f32.mrf.mxu0
      %425 = vdwg.mxu0
      %v426 = vadd.f32 %v351, %v423
      %427 = vst [vmem:[#allocation8] sm:$0x1] %v426
    $region45: #{tpu_custom_call.1} parent=1 // pred_fallthru
      _
    // Predicated region
    $region46: #{tpu_custom_call.1} parent=1 // pred_check
      _
    $region47: #{tpu_custom_call.1} parent=1 // pred_check_branch
      %429 = sbr.rel (0) target = $region49
    $region48: #{tpu_custom_call.1} parent=1 // pred_region
      %s431 = ssub.s32 128, 128
      %432 = vsyncadd [#allocation4], %s431
      %s434 = sshll.u32 [#allocation8], 4
      %s435 = int_to_ptr.vmem [resolvable:$true] %s434
      %437 = dma.vmem_to_hbm [thread:$0]  %s435, 128, %s5, [#allocation4]
    $region49: #{tpu_custom_call.1} parent=1 // pred_fallthru
      _
    // Predicated region
    $region50: #{tpu_custom_call.1} parent=1 // pred_check
      _
    $region51: #{tpu_custom_call.1} parent=1 // pred_check_branch
      %439 = sbr.rel (0) target = $region53
    $region52: #{tpu_custom_call.1} parent=1 // pred_region
      %440 = dma.done [#allocation4], 128
    $region53: #{tpu_custom_call.1} parent=1 // pred_fallthru
      _
    %441 = vsyncpa [#allocation3], 1
    %442 = vsyncpa [#allocation6], 1
    %443 = vsyncpa [#allocation4], 1

</llo_original>
